<compile_context>
chip_gen: v7x
topology: tpu7x:2x2x1
jax: 0.10.0
libtpu: 0.0.40
codegen_flags: <defaults>
</compile_context>

<pallas_src>
import math

import jax
import jax.numpy as jnp
from jax.experimental import pallas as pl
from jax.experimental.pallas import tpu as pltpu


def _affine_mod_kernel(x_ref, alpha_ref, beta_ref, o_ref):
    # x_ref:     (1, TM, Cp) activations tile
    # alpha_ref: (1, 1, Cp)  per-batch scale (lane-packed)
    # beta_ref:  (1, 1, Cp)  per-batch bias  (lane-packed)
    o_ref[...] = (x_ref[...] * alpha_ref[...] + beta_ref[...]).astype(o_ref.dtype)


def _pack_factor(C, M):
    """Smallest k with (C*k) % 128 == 0 and k | M (lane-dense packing)."""
    if C % 128 == 0:
        return 1
    for k in range(2, 129):
        if (C * k) % 128 == 0 and M % k == 0:
            return k
    return 1


def affine_mod(x, z, w_alpha, b_alpha, w_beta=None, b_beta=None):
    """Pallas implementation of AffineMod.forward (mod_bias iff w_beta given)."""
    x_shape = x.shape
    B = x_shape[0]
    C = x_shape[-1]
    M = int(math.prod(x_shape[1:-1])) if len(x_shape) > 2 else 1
    S = z.shape[-1]

    # Matches torch: z.reshape(z_shape[0], 1, z_shape[-1]) -- requires the
    # middle dims of z to be size-1, same error semantics as the reference.
    z2 = z.reshape(B, S)

    # alpha/beta: tiny (B,S)x(S,C) matmuls -> plain XLA in the wrapper.
    alpha = jnp.dot(z2, w_alpha.T, preferred_element_type=jnp.float32) + b_alpha  # (B, C)
    if w_beta is not None:
        beta = jnp.dot(z2, w_beta.T, preferred_element_type=jnp.float32) + b_beta  # (B, C)
    else:
        beta = jnp.zeros_like(alpha)

    # Lane-pack channels so each packed row fills a multiple of 128 lanes.
    k = _pack_factor(C, M)
    Mp = M // k
    Cp = C * k

    x3 = x.reshape(B, Mp, Cp)
    alpha_p = jnp.tile(alpha, (1, k)).reshape(B, 1, Cp)
    beta_p = jnp.tile(beta, (1, k)).reshape(B, 1, Cp)

    # M-tile: cap per-buffer size (~4 MiB). With default double-buffering of
    # x and out that is ~16 MiB of VMEM -- within the default scoped-VMEM
    # budget on v5e/v6e (32/128 MiB) and v7x (32/64 MiB).
    bytes_per_row = Cp * jnp.dtype(x.dtype).itemsize
    tm = min(Mp, max(8, ((4 * 1024 * 1024) // max(bytes_per_row, 1)) // 8 * 8))
    if tm >= Mp:
        tm = Mp  # full extent -> always a legal block shape
    grid = (B, pl.cdiv(Mp, tm))

    out = pl.pallas_call(
        _affine_mod_kernel,
        out_shape=jax.ShapeDtypeStruct((B, Mp, Cp), x.dtype),
        grid=grid,
        in_specs=[
            pl.BlockSpec((1, tm, Cp), lambda b, m: (b, m, 0)),   # x tile
            pl.BlockSpec((1, 1, Cp), lambda b, m: (b, 0, 0)),    # alpha (per batch)
            pl.BlockSpec((1, 1, Cp), lambda b, m: (b, 0, 0)),    # beta  (per batch)
        ],
        out_specs=pl.BlockSpec((1, tm, Cp), lambda b, m: (b, m, 0)),
        compiler_params=pltpu.CompilerParams(
            dimension_semantics=("parallel", "parallel")),
    )(x3, alpha_p, beta_p)

    return out.reshape(x_shape)


def affine_mod_ref(x, z, w_alpha, b_alpha, w_beta=None, b_beta=None):
    """Pure-JAX reference matching the PyTorch forward."""
    B = x.shape[0]
    C = x.shape[-1]
    x3 = x.reshape(B, -1, C)
    z2 = z.reshape(B, z.shape[-1])
    alpha = z2 @ w_alpha.T + b_alpha
    out = x3 * alpha[:, None, :]
    if w_beta is not None:
        beta = z2 @ w_beta.T + b_beta
        out = out + beta[:, None, :]
    return out.reshape(x.shape)


if __name__ == "__main__":
    key = jax.random.PRNGKey(0)
    kx, kz, kwa, kwb, kx2, kz2 = jax.random.split(key, 6)

    # Case 1: small channel count -> exercises lane packing (C=32, k=4, Cp=128).
    B, H, W, C, S = 2, 8, 8, 32, 16
    x = jax.random.normal(kx, (B, H, W, C), dtype=jnp.float32)
    z = jax.random.normal(kz, (B, S), dtype=jnp.float32)

    # Parameter init mirrors AffineMod.__init__ (deterministic).
    w_alpha = jax.random.normal(kwa, (C, S), dtype=jnp.float32) / jnp.sqrt(float(S))
    b_alpha = jnp.ones((C,), dtype=jnp.float32)
    w_beta = jax.random.normal(kwb, (C, S), dtype=jnp.float32) / jnp.sqrt(float(S))
    b_beta = jnp.zeros((C,), dtype=jnp.float32)

    out = affine_mod(x, z, w_alpha, b_alpha, w_beta, b_beta)
    out = jax.block_until_ready(out)
    ref = affine_mod_ref(x, z, w_alpha, b_alpha, w_beta, b_beta)
    assert out.shape == ref.shape, (out.shape, ref.shape)
    assert jnp.allclose(out, ref, atol=1e-5, rtol=1e-5), "mismatch vs reference (packed)"

    # Case 2: lane-aligned channel count (C=128) -> no packing path.
    C2 = 128
    x2 = jax.random.normal(kx2, (B, H, W, C2), dtype=jnp.float32)
    z2 = jax.random.normal(kz2, (B, S), dtype=jnp.float32)
    w_alpha2 = jax.random.normal(kwa, (C2, S), dtype=jnp.float32) / jnp.sqrt(float(S))
    b_alpha2 = jnp.ones((C2,), dtype=jnp.float32)
    w_beta2 = jax.random.normal(kwb, (C2, S), dtype=jnp.float32) / jnp.sqrt(float(S))
    b_beta2 = jnp.zeros((C2,), dtype=jnp.float32)

    out2 = affine_mod(x2, z2, w_alpha2, b_alpha2, w_beta2, b_beta2)
    out2 = jax.block_until_ready(out2)
    ref2 = affine_mod_ref(x2, z2, w_alpha2, b_alpha2, w_beta2, b_beta2)
    assert out2.shape == ref2.shape, (out2.shape, ref2.shape)
    assert jnp.allclose(out2, ref2, atol=1e-5, rtol=1e-5), "mismatch vs reference (unpacked)"

    print("KERNEL_OK")
</pallas_src>

<mosaic_0001>
module attributes {stable_mosaic.version = 11 : i64} {
  func.func @_affine_mod_kernel(%arg0: i32, %arg1: i32, %arg2: memref<1x16x128xf32, #tpu.memory_space<vmem>>, %arg3: memref<1x1x128xf32, #tpu.memory_space<vmem>>, %arg4: memref<1x1x128xf32, #tpu.memory_space<vmem>>, %arg5: memref<1x16x128xf32, #tpu.memory_space<vmem>>) attributes {dimension_semantics = [#tpu.dimension_semantics<parallel>, #tpu.dimension_semantics<parallel>], iteration_bounds = array<i64: 2, 1>, scalar_prefetch = 0 : i64, scratch_operands = 0 : i64, tpu.core_type = #tpu.core_type<tc>, window_params = [{transform_indices = @transform_0, window_bounds = array<i64: 1, 16, 128>}, {transform_indices = @transform_1, window_bounds = array<i64: 1, 1, 128>}, {transform_indices = @transform_2, window_bounds = array<i64: 1, 1, 128>}, {transform_indices = @transform_3, window_bounds = array<i64: 1, 16, 128>}]} {
    %c0 = arith.constant 0 : index
    %c0_0 = arith.constant 0 : index
    %c0_1 = arith.constant 0 : index
    %0 = vector.load %arg2[%c0, %c0_0, %c0_1] : memref<1x16x128xf32, #tpu.memory_space<vmem>>, vector<1x16x128xf32>
    %c0_2 = arith.constant 0 : index
    %c0_3 = arith.constant 0 : index
    %c0_4 = arith.constant 0 : index
    %1 = vector.load %arg3[%c0_2, %c0_3, %c0_4] : memref<1x1x128xf32, #tpu.memory_space<vmem>>, vector<1x1x128xf32>
    %2 = vector.broadcast %1 : vector<1x1x128xf32> to vector<1x16x128xf32>
    %3 = arith.mulf %0, %2 : vector<1x16x128xf32>
    %c0_5 = arith.constant 0 : index
    %c0_6 = arith.constant 0 : index
    %c0_7 = arith.constant 0 : index
    %4 = vector.load %arg4[%c0_5, %c0_6, %c0_7] : memref<1x1x128xf32, #tpu.memory_space<vmem>>, vector<1x1x128xf32>
    %5 = vector.broadcast %4 : vector<1x1x128xf32> to vector<1x16x128xf32>
    %6 = arith.addf %3, %5 : vector<1x16x128xf32>
    %c0_8 = arith.constant 0 : index
    %c0_9 = arith.constant 0 : index
    %c0_10 = arith.constant 0 : index
    %7 = vector.load %arg5[%c0_8, %c0_9, %c0_10] : memref<1x16x128xf32, #tpu.memory_space<vmem>>, vector<1x16x128xf32>
    tpu.vector_store %arg5[%c0_8, %c0_9, %c0_10], %6 {strides = array<i32>} : memref<1x16x128xf32, #tpu.memory_space<vmem>>, vector<1x16x128xf32>,
    return
  }
  func.func @transform_0(%arg0: i32, %arg1: i32) -> (i32, i32, i32) {
    %c0_i32 = arith.constant 0 : i32
    %c0_i32_0 = arith.constant 0 : i32
    return %arg0, %arg1, %c0_i32 : i32, i32, i32
  }
  func.func @transform_1(%arg0: i32, %arg1: i32) -> (i32, i32, i32) {
    %c0_i32 = arith.constant 0 : i32
    %c0_i32_0 = arith.constant 0 : i32
    %c0_i32_1 = arith.constant 0 : i32
    return %arg0, %c0_i32, %c0_i32_0 : i32, i32, i32
  }
  func.func @transform_2(%arg0: i32, %arg1: i32) -> (i32, i32, i32) {
    %c0_i32 = arith.constant 0 : i32
    %c0_i32_0 = arith.constant 0 : i32
    %c0_i32_1 = arith.constant 0 : i32
    return %arg0, %c0_i32, %c0_i32_0 : i32, i32, i32
  }
  func.func @transform_3(%arg0: i32, %arg1: i32) -> (i32, i32, i32) {
    %c0_i32 = arith.constant 0 : i32
    %c0_i32_0 = arith.constant 0 : i32
    return %arg0, %arg1, %c0_i32 : i32, i32, i32
  }
}

</mosaic_0001>

<llo_original>
// kernel: tpu_custom_call.1
$region0: #{tpu_custom_call.1}
  #allocation0 [shape = 'u32[]', space=smem, size = 0x4, offset = 0x4, fixed_abs, tag = 'smem constant byte address 0x4 - core index']
  #allocation1 [shape = 'u32[144,128]{1,0:T(1,128)}', space=vmem, size = 0x12000, scoped, tag = 'internal scratch']
  %s0 = inlined_call_operand.hbm [shape: f32[2,16,128], index: 0, kind: input, shape index: {}]
  %s1 = inlined_call_operand.vmem [shape: f32[2,1,128], index: 1, kind: input, shape index: {}]
  %s2 = inlined_call_operand.vmem [shape: f32[2,1,128], index: 2, kind: input, shape index: {}]
  %s3 = inlined_call_operand.hbm [shape: f32[2,16,128], index: 3, kind: output, shape index: {}]
  %s4 = sld [smem:[#allocation0]]
  $region49: #{tpu_custom_call.1} parent=0
    _
  %s6 = ssub.s32 1, %s4
  %s7 = scalar_select 0, %s6, %s4
  $region1: #{tpu_custom_call.1} parent=0
    #allocation2 [shape = 'u8[16384]{0}', space=vmem, size = 0x4000, scoped, tag = 'input window, operand 0']
    #allocation3 [shape = 's32[2]{0}', space=sflag, size = 0x8, scoped, tag = 'scoped memory for tpu_custom_call.1']
    #allocation4 [shape = 's32[2]{0}', space=sflag, size = 0x8, scoped, tag = 'scoped memory for tpu_custom_call.1']
    #allocation5 [shape = 'u8[16384]{0}', space=vmem, size = 0x4000, scoped, tag = 'output window, operand 0']
    %8 = vsyncpa [#allocation3], 0
    %s9 = scalar_lea.sflag [#allocation3], 1
    %10 = vsyncpa %s9, 0
    %11 = vsyncpa [#allocation4], 0
    %s12 = scalar_lea.sflag [#allocation4], 1
    %13 = vsyncpa %s12, 0
    loop: start=0, step=1, limit=4
    $region2: #{tpu_custom_call.1} parent=1 // loop_pre_header
      _
    $region3: #{tpu_custom_call.1} parent=1 // loop_header
      %s15 = sphi 0, %s19
      %p16 = scmp.ge.s32.totalorder %s15, 4
      %s22 = sphi 0, %s34
      %s23 = sphi 0, %s30
      %s24 = sphi 0, %s22
      %s25 = sphi 0, %s23
      %s26 = sphi 0, %s24
      %s27 = sphi 0, %s25
      %s39 = sphi 0, %s41
      %s42 = sphi 0, %s39
      %s43 = sphi 0, %s42
      %s59 = sphi 0, %s43
      %s65 = sphi 0, %s67
      %s68 = sphi 0, %s65
      %s69 = sphi 0, %s68
      %s85 = sphi 0, %s69
      %s91 = sphi 0, %s93
      %s94 = sphi 0, %s91
      %s95 = sphi 0, %s94
      %s111 = sphi 0, %s95
      %s119 = sphi 0, %s121
      %s122 = sphi 0, %s119
      %s123 = sphi 0, %s122
      %s139 = sphi 0, %s123
    $region4: #{tpu_custom_call.1} parent=1 // loop_header_branch
      %18 = sbr.rel (%p16) target = $region8
    $region5: #{tpu_custom_call.1} parent=1 // loop_body
      %s20 = ssub.s32 %s15, 1
      %s21 = ssub.s32 %s15, 2
      %s28 = sadd.s32 1, %s23
      %p29 = scmp.ge.s32.totalorder %s28, 1
      %s30 = scalar_select %p29, 0, %s28
      %s31 = sadd.s32 1, %s22
      %s32 = scalar_select %p29, %s31, %s22
      %p33 = scmp.ge.s32.totalorder %s32, 2
      %s34 = scalar_select %p33, 0, %s32
      %s35 = ssub.s32 %s22, %s34
      %s36 = ssub.s32 %s23, %s30
      %s37 = sor.u32 %s35, %s36
      %p38 = scmp.eq.s32.totalorder %s37, 0
      %s40 = sadd.s32 %s39, 1
      %s41 = scalar_select %p38, %s39, %s40
      %p44 = pneg %p38
      %p45 = scmp.eq.s32.totalorder %s15, 1
      %p46 = por %p44, %p45
      %p47 = scmp.ne.s32.totalorder %s39, %s42
      %p48 = scmp.eq.s32.totalorder %s15, 0
      %p49 = por %p47, %p48
      %p50 = scmp.ne.s32.totalorder %s39, %s42
      %p51 = scmp.eq.s32.totalorder %s20, 1
      %p52 = por %p50, %p51
      %p53 = scmp.ne.s32.totalorder %s42, %s43
      %p54 = scmp.eq.s32.totalorder %s20, 0
      %p55 = por %p53, %p54
      %p56 = scmp.ne.s32.totalorder %s42, %s43
      %p57 = scmp.eq.s32.totalorder %s21, 1
      %p58 = por %p56, %p57
      %p60 = scmp.ne.s32.totalorder %s43, %s59
      %p61 = scmp.eq.s32.totalorder %s21, 0
      %p62 = por %p60, %p61
      %s63 = ssub.s32 %s22, %s34
      %p64 = scmp.eq.s32.totalorder %s63, 0
      %s66 = sadd.s32 %s65, 1
      %s67 = scalar_select %p64, %s65, %s66
      %p70 = pneg %p64
      %p71 = scmp.eq.s32.totalorder %s15, 1
      %p72 = por %p70, %p71
      %p73 = scmp.ne.s32.totalorder %s65, %s68
      %p74 = scmp.eq.s32.totalorder %s15, 0
      %p75 = por %p73, %p74
      %p76 = scmp.ne.s32.totalorder %s65, %s68
      %p77 = scmp.eq.s32.totalorder %s20, 1
      %p78 = por %p76, %p77
      %p79 = scmp.ne.s32.totalorder %s68, %s69
      %p80 = scmp.eq.s32.totalorder %s20, 0
      %p81 = por %p79, %p80
      %p82 = scmp.ne.s32.totalorder %s68, %s69
      %p83 = scmp.eq.s32.totalorder %s21, 1
      %p84 = por %p82, %p83
      %p86 = scmp.ne.s32.totalorder %s69, %s85
      %p87 = scmp.eq.s32.totalorder %s21, 0
      %p88 = por %p86, %p87
      %s89 = ssub.s32 %s22, %s34
      %p90 = scmp.eq.s32.totalorder %s89, 0
      %s92 = sadd.s32 %s91, 1
      %s93 = scalar_select %p90, %s91, %s92
      %p96 = pneg %p90
      %p97 = scmp.eq.s32.totalorder %s15, 1
      %p98 = por %p96, %p97
      %p99 = scmp.ne.s32.totalorder %s91, %s94
      %p100 = scmp.eq.s32.totalorder %s15, 0
      %p101 = por %p99, %p100
      %p102 = scmp.ne.s32.totalorder %s91, %s94
      %p103 = scmp.eq.s32.totalorder %s20, 1
      %p104 = por %p102, %p103
      %p105 = scmp.ne.s32.totalorder %s94, %s95
      %p106 = scmp.eq.s32.totalorder %s20, 0
      %p107 = por %p105, %p106
      %p108 = scmp.ne.s32.totalorder %s94, %s95
      %p109 = scmp.eq.s32.totalorder %s21, 1
      %p110 = por %p108, %p109
      %p112 = scmp.ne.s32.totalorder %s95, %s111
      %p113 = scmp.eq.s32.totalorder %s21, 0
      %p114 = por %p112, %p113
      %s115 = ssub.s32 %s22, %s34
      %s116 = ssub.s32 %s23, %s30
      %s117 = sor.u32 %s115, %s116
      %p118 = scmp.eq.s32.totalorder %s117, 0
      %s120 = sadd.s32 %s119, 1
      %s121 = scalar_select %p118, %s119, %s120
      %p124 = pneg %p118
      %p125 = scmp.eq.s32.totalorder %s15, 1
      %p126 = por %p124, %p125
      %p127 = scmp.ne.s32.totalorder %s119, %s122
      %p128 = scmp.eq.s32.totalorder %s15, 0
      %p129 = por %p127, %p128
      %p130 = scmp.ne.s32.totalorder %s119, %s122
      %p131 = scmp.eq.s32.totalorder %s20, 1
      %p132 = por %p130, %p131
      %p133 = scmp.ne.s32.totalorder %s122, %s123
      %p134 = scmp.eq.s32.totalorder %s20, 0
      %p135 = por %p133, %p134
      %p136 = scmp.ne.s32.totalorder %s122, %s123
      %p137 = scmp.eq.s32.totalorder %s21, 1
      %p138 = por %p136, %p137
      %p140 = scmp.ne.s32.totalorder %s123, %s139
      %p141 = scmp.eq.s32.totalorder %s21, 0
      %p142 = por %p140, %p141
      %p143 = scmp.le.s32.totalorder 1, %s15
      %p144 = scmp.lt.s32.totalorder %s15, 3
      %p145 = pnand %p143, %p144
      %p146 = pneg %p145
      // Predicated region
      $region9: #{tpu_custom_call.1} parent=5 // pred_check
        _
      $region10: #{tpu_custom_call.1} parent=5 // pred_check_branch
        %148 = sbr.rel (%p145) target = $region12
      $region11: #{tpu_custom_call.1} parent=5 // pred_region
        %s149 = ssub.s32 %s15, 1
      $region12: #{tpu_custom_call.1} parent=5 // pred_fallthru
        _
      %p150 = scmp.lt.s32.totalorder %s15, 2
      // Predicated region
      $region13: #{tpu_custom_call.1} parent=5 // pred_check
        %p151 = pneg %p150
      $region14: #{tpu_custom_call.1} parent=5 // pred_check_branch
        %153 = sbr.rel (%p151) target = $region16
      $region15: #{tpu_custom_call.1} parent=5 // pred_region
        // Predicated region
        $region17: #{tpu_custom_call.1} parent=15 // pred_check
          %p154 = pneg %p49
        $region18: #{tpu_custom_call.1} parent=15 // pred_check_branch
          %156 = sbr.rel (%p154) target = $region20
        $region19: #{tpu_custom_call.1} parent=15 // pred_region
          %s157 = sand.u32 %s39, 1
          %s158 = scalar_lea.sflag [#allocation3], %s157
          %s159 = sand.u32 %s39, 1
          %s160 = smul.addr %s159, 16
          %s161 = scalar_lea.vmem [#allocation2], %s160
          %s162 = smul.u32 2, %s23
          %s164 = ssub.s32 256, 256
          %165 = vsyncadd %s158, %s164
          %s166 = smul.addr %s22, 2
          %s167 = sadd.s32 %s162, %s166
          %s168 = smul.addr %s167, 128
          %s169 = scalar_lea.hbm %s0, %s168
          %s170 = sshll.u32 %s161, 4
          %s171 = int_to_ptr.vmem [resolvable:$true] %s170
          %176 = dma.hbm_to_vmem [thread:$0]  %s169, 256, %s171, %s158, 128, 128, 8
        $region20: #{tpu_custom_call.1} parent=15 // pred_fallthru
          _
        // Predicated region
        $region21: #{tpu_custom_call.1} parent=15 // pred_check
          %p177 = pneg %p75
        $region22: #{tpu_custom_call.1} parent=15 // pred_check_branch
          %179 = sbr.rel (%p177) target = $region24
        $region23: #{tpu_custom_call.1} parent=15 // pred_region
          %p180 = scmp.lt.s32.totalorder %s22, 1
          %s181 = scalar_select %p180, %s22, 1
          %s182 = scalar_lea.vmem %s1, %s181
        $region24: #{tpu_custom_call.1} parent=15 // pred_fallthru
          _
        // Predicated region
        $region25: #{tpu_custom_call.1} parent=15 // pred_check
          %p183 = pneg %p101
        $region26: #{tpu_custom_call.1} parent=15 // pred_check_branch
          %185 = sbr.rel (%p183) target = $region28
        $region27: #{tpu_custom_call.1} parent=15 // pred_region
          %p186 = scmp.lt.s32.totalorder %s22, 1
          %s187 = scalar_select %p186, %s22, 1
          %s188 = scalar_lea.vmem %s2, %s187
        $region28: #{tpu_custom_call.1} parent=15 // pred_fallthru
          _
      $region16: #{tpu_custom_call.1} parent=5 // pred_fallthru
        _
      %p189 = scmp.le.s32.totalorder 1, %s15
      %p190 = scmp.lt.s32.totalorder %s15, 3
      %p191 = pnand %p189, %p190
      %p192 = pneg %p191
      // Predicated region
      $region29: #{tpu_custom_call.1} parent=5 // pred_check
        _
      $region30: #{tpu_custom_call.1} parent=5 // pred_check_branch
        %194 = sbr.rel (%p191) target = $region32
      $region31: #{tpu_custom_call.1} parent=5 // pred_region
        %s195 = ssub.s32 %s15, 1
        %s196 = sand.u32 %s42, 1
        %s197 = scalar_lea.sflag [#allocation3], %s196
        %s198 = sand.u32 %s42, 1
        %s199 = smul.addr %s198, 16
        %s200 = scalar_lea.vmem [#allocation2], %s199
        // Predicated region
        $region33: #{tpu_custom_call.1} parent=31 // pred_check
          %p201 = pneg %p55
        $region34: #{tpu_custom_call.1} parent=31 // pred_check_branch
          %203 = sbr.rel (%p201) target = $region36
        $region35: #{tpu_custom_call.1} parent=31 // pred_region
          %204 = dma.done %s197, 256
        $region36: #{tpu_custom_call.1} parent=31 // pred_fallthru
          _
        %s205 = sand.u32 %s42, 1
        %s206 = scalar_lea.sflag [#allocation3], %s205
        %s207 = sand.u32 %s42, 1
        %s208 = smul.addr %s207, 16
        %s209 = scalar_lea.vmem [#allocation2], %s208
        %p210 = pneg %p55
        %p211 = pneg %p52
        %p212 = scmp.lt.s32.totalorder %s24, 1
        %s213 = scalar_select %p212, %s24, 1
        %s214 = scalar_lea.vmem %s1, %s213
        %p215 = pneg %p81
        %p216 = pneg %p78
        %p217 = scmp.lt.s32.totalorder %s24, 1
        %s218 = scalar_select %p217, %s24, 1
        %s219 = scalar_lea.vmem %s2, %s218
        %p220 = pneg %p107
        %p221 = pneg %p104
        %p222 = pneg %p135
        %p223 = pneg %p132
        %s224 = sand.u32 %s122, 1
        %s225 = scalar_lea.sflag [#allocation4], %s224
        %s226 = sand.u32 %s122, 1
        %s227 = smul.addr %s226, 16
        %s228 = scalar_lea.vmem [#allocation5], %s227
        %s229 = smul.u32 2, %s25
        %p230 = scmp.lt.s32.totalorder %s24, 1
        %s231 = scalar_select %p230, %s24, 1
        %s232 = scalar_lea.vmem %s1, %s231
        %p233 = scmp.lt.s32.totalorder %s24, 1
        %s234 = scalar_select %p233, %s24, 1
        %s235 = scalar_lea.vmem %s2, %s234
        %s236 = smul.u32 2, %s25
        %v237 = vld [vmem:[%s200] sm:$0xff]
        %v238 = vld [vmem:[%s200 + $0x8] sm:$0xff]
        %v239 = vld [vmem:[%s232] sm:$0x1]
        %v241 = vlaneseq
        %v242 = vshrl.u32 %v241, 7
        %v243 = vsub.s32 0, %v242
        %v244 = vrot.slane %v239, %v243
        %v246 = vmul.f32 %v237, %v244
        %v247 = vmul.f32 %v238, %v244
        %v248 = vld [vmem:[%s235] sm:$0x1]
        %v250 = vlaneseq
        %v251 = vshrl.u32 %v250, 7
        %v252 = vsub.s32 0, %v251
        %v253 = vrot.slane %v248, %v252
        %v255 = vadd.f32 %v246, %v253
        %v256 = vadd.f32 %v247, %v253
        %257 = vst [vmem:[%s228] sm:$0xff] %v255
        %258 = vst [vmem:[%s228 + $0x8] sm:$0xff] %v256
        %s259 = sand.u32 %s122, 1
        %s260 = scalar_lea.sflag [#allocation4], %s259
        %s261 = sand.u32 %s122, 1
        %s262 = smul.addr %s261, 16
        %s263 = scalar_lea.vmem [#allocation5], %s262
        // Predicated region
        $region37: #{tpu_custom_call.1} parent=31 // pred_check
          %p264 = pneg %p132
        $region38: #{tpu_custom_call.1} parent=31 // pred_check_branch
          %266 = sbr.rel (%p264) target = $region40
        $region39: #{tpu_custom_call.1} parent=31 // pred_region
          %s267 = smul.u32 2, %s25
          %s269 = ssub.s32 256, 256
          %270 = vsyncadd %s260, %s269
          %s271 = smul.addr %s24, 2
          %s272 = sadd.s32 %s267, %s271
          %s273 = smul.addr %s272, 128
          %s274 = scalar_lea.hbm %s3, %s273
          %s275 = sshll.u32 %s263, 4
          %s276 = int_to_ptr.vmem [resolvable:$true] %s275
          %281 = dma.vmem_to_hbm [thread:$0]  %s276, 256, %s274, %s260, 128, 128, 8
        $region40: #{tpu_custom_call.1} parent=31 // pred_fallthru
          _
      $region32: #{tpu_custom_call.1} parent=5 // pred_fallthru
        _
      %p282 = scmp.le.s32.totalorder 2, %s15
      // Predicated region
      $region41: #{tpu_custom_call.1} parent=5 // pred_check
        %p283 = pneg %p282
      $region42: #{tpu_custom_call.1} parent=5 // pred_check_branch
        %285 = sbr.rel (%p283) target = $region44
      $region43: #{tpu_custom_call.1} parent=5 // pred_region
        %s286 = ssub.s32 %s15, 2
        // Predicated region
        $region45: #{tpu_custom_call.1} parent=43 // pred_check
          %p287 = pneg %p138
        $region46: #{tpu_custom_call.1} parent=43 // pred_check_branch
          %289 = sbr.rel (%p287) target = $region48
        $region47: #{tpu_custom_call.1} parent=43 // pred_region
          %s290 = sand.u32 %s123, 1
          %s291 = scalar_lea.sflag [#allocation4], %s290
          %s292 = sand.u32 %s123, 1
          %s293 = smul.addr %s292, 16
          %s294 = scalar_lea.vmem [#allocation5], %s293
          %295 = dma.done %s291, 256
        $region48: #{tpu_custom_call.1} parent=43 // pred_fallthru
          _
      $region44: #{tpu_custom_call.1} parent=5 // pred_fallthru
        _
    $region6: #{tpu_custom_call.1} parent=1 // loop_footer
      %s19 = sadd.s32 1, %s15
    $region7: #{tpu_custom_call.1} parent=1 // loop_footer_branch
      %14 = sbr.rel target = $region3
    $region8: #{tpu_custom_call.1} parent=1 // loop_exit
      _
    %296 = vsyncpa [#allocation3], 1
    %s297 = scalar_lea.sflag [#allocation3], 1
    %298 = vsyncpa %s297, 1
    %299 = vsyncpa [#allocation4], 1
    %s300 = scalar_lea.sflag [#allocation4], 1
    %301 = vsyncpa %s300, 1

</llo_original>
